<compile_context>
chip_gen: v5e
topology: v5e:2x2
jax: 0.10.0
libtpu: 0.0.40
codegen_flags: <defaults>
</compile_context>

<pallas_src>
import functools

import jax
import jax.numpy as jnp
from jax.experimental import pallas as pl
from jax.experimental.pallas import tpu as pltpu

_LANE = 128
_SUBLANE = 8


def _round_up(x, m):
    return ((x + m - 1) // m) * m


def _decoder_kernel(x_ref, w1_ref, b1_ref, w2_ref, b2_ref, o_ref, *,
                    n_float, compute_dtype, approx_recip):
    # Layer 1: (TM, K) @ (K, HID_PAD) on the MXU, f32 accumulation.
    x = x_ref[...].astype(compute_dtype)          # cast after the VMEM load (free)
    h = jnp.dot(x, w1_ref[...], preferred_element_type=jnp.float32)
    h = jnp.maximum(h + b1_ref[...], 0.0)

    # Layer 2: (TM, HID_PAD) @ (HID_PAD, OUT_COLS).
    o = jnp.dot(h.astype(compute_dtype), w2_ref[...],
                preferred_element_type=jnp.float32)
    o = o + b2_ref[...]

    # Column-split activation: relu on [:n_float), sigmoid on the rest.
    # Single-row iota mask, broadcast over the batch tile by jnp.where.
    col = jax.lax.broadcasted_iota(jnp.int32, (1, o.shape[1]), 1)
    relu_part = jnp.maximum(o, 0.0)
    # sigmoid = 1 / (1 + exp(-o)): exp on EUP; approx reciprocal only in bf16 mode.
    sig_part = pl.reciprocal(1.0 + jnp.exp(-o), approx=approx_recip)
    o_ref[...] = jnp.where(col < n_float, relu_part, sig_part)


def prepare_decoder_params(w1, b1, w2, b2, *, use_bf16=False):
    """Pad/cast decoder parameters ONCE (hoisted out of the per-call path).

    w1 : (input_dim, hidden)   b1 : (1, hidden) or (hidden,)
    w2 : (hidden, output_dim)  b2 : (1, output_dim) or (output_dim,)
    Hidden is zero-padded to a lane multiple (math stays exact: zero w1 columns give
    relu(0)=0 hidden pads, zero w2 rows contribute 0).  Narrow outputs stay UNPADDED.
    """
    in_dim, hid = w1.shape
    out_dim = w2.shape[1]
    hid_pad = _round_up(hid, _LANE)
    # Narrow outputs (< 128) unpadded: padded writeback would inflate HBM traffic.
    out_cols = out_dim if out_dim < _LANE else _round_up(out_dim, _LANE)

    w_dtype = jnp.bfloat16 if use_bf16 else jnp.float32
    w1p = jnp.pad(w1.astype(jnp.float32),
                  ((0, 0), (0, hid_pad - hid))).astype(w_dtype)
    b1p = jnp.pad(b1.astype(jnp.float32).reshape(1, -1),
                  ((0, 0), (0, hid_pad - hid)))
    w2p = jnp.pad(w2.astype(jnp.float32),
                  ((0, hid_pad - hid), (0, out_cols - out_dim))).astype(w_dtype)
    b2p = jnp.pad(b2.astype(jnp.float32).reshape(1, -1),
                  ((0, 0), (0, out_cols - out_dim)))
    return {"w1": w1p, "b1": b1p, "w2": w2p, "b2": b2p, "out_dim": out_dim}


def outcome_decoder(latent, params, *, n_float, tm=512):
    """Run the decoder forward.  latent: (B, input_dim); returns (B, output_dim) f32."""
    w1p, b1p, w2p, b2p = params["w1"], params["b1"], params["w2"], params["b2"]
    out_dim = params["out_dim"]

    B, in_dim = latent.shape
    hid_pad = w1p.shape[1]
    out_cols = w2p.shape[1]
    compute_dtype = w1p.dtype
    use_bf16 = compute_dtype == jnp.bfloat16

    # Batch tiling on the UNPADDED batch; Pallas masks the ragged last block.
    tm = max(_SUBLANE, min(_round_up(tm, _SUBLANE), _round_up(B, _SUBLANE)))
    if B > 2 * _SUBLANE and pl.cdiv(B, tm) < 2:
        # Keep >= 2 grid steps so both v7x TensorCores get work ("parallel" axis).
        tm = _round_up(pl.cdiv(B, 2), _SUBLANE)
    grid = (pl.cdiv(B, tm),)

    # VMEM budget: single-buffered resident weights + double-buffered streamed tiles,
    # with headroom below v7x's 64 MiB physical VMEM (cap at 48 MiB).
    in_bytes = latent.dtype.itemsize
    w_bytes = w1p.dtype.itemsize
    weights_bytes = (in_dim * hid_pad + hid_pad * out_cols) * w_bytes \
        + (hid_pad + out_cols) * 4
    io_bytes = 2 * tm * (in_dim * in_bytes + out_cols * 4)
    vmem_limit = int(min(48 * 1024 * 1024,
                         max(16 * 1024 * 1024, 2 * (weights_bytes + io_bytes))))

    cost = pl.CostEstimate(
        flops=2 * B * (in_dim * hid_pad + hid_pad * out_cols),
        transcendentals=B * out_cols,            # exp runs over every output column
        bytes_accessed=B * in_dim * in_bytes + weights_bytes + B * out_cols * 4,
    )

    kernel = functools.partial(_decoder_kernel, n_float=n_float,
                               compute_dtype=compute_dtype,
                               approx_recip=use_bf16)

    def stream(i):            # latent / out tiles walk the batch
        return (i, 0)

    def resident(i):          # weights & biases: DMA'd once, stay VMEM-resident
        return (0, 0)

    def build(single_buffer_residents):
        res_kwargs = ({"pipeline_mode": pl.Buffered(1)}
                      if single_buffer_residents else {})
        return pl.pallas_call(
            kernel,
            out_shape=jax.ShapeDtypeStruct((B, out_cols), jnp.float32),
            grid=grid,
            in_specs=[
                pl.BlockSpec((tm, in_dim), stream),
                pl.BlockSpec((in_dim, hid_pad), resident, **res_kwargs),
                pl.BlockSpec((1, hid_pad), resident, **res_kwargs),
                pl.BlockSpec((hid_pad, out_cols), resident, **res_kwargs),
                pl.BlockSpec((1, out_cols), resident, **res_kwargs),
            ],
            out_specs=pl.BlockSpec((tm, out_cols), stream),
            compiler_params=pltpu.CompilerParams(
                dimension_semantics=("parallel",),
                vmem_limit_bytes=vmem_limit,
            ),
            cost_estimate=cost,
        )

    try:
        out = build(True)(latent, w1p, b1p, w2p, b2p)
    except Exception:
        # Fallback: this jax build rejects Buffered(1) on resident inputs; default
        # double-buffering is functionally identical (just uses more VMEM).
        out = build(False)(latent, w1p, b1p, w2p, b2p)

    return out if out_cols == out_dim else out[:, :out_dim]


def outcome_decoder_ref(latent, w1, b1, w2, b2, *, n_float):
    """Pure-JAX reference (mirrors the PyTorch forward)."""
    h = jax.nn.relu(latent.astype(jnp.float32) @ w1 + b1)
    o = h @ w2 + b2
    return jnp.concatenate(
        [jax.nn.relu(o[:, :n_float]), jax.nn.sigmoid(o[:, n_float:])], axis=1
    )


def init_linear(key, fan_in, fan_out):
    """Deterministic init mimicking torch.nn.Linear (uniform +/- 1/sqrt(fan_in))."""
    kw, kb = jax.random.split(key)
    bound = 1.0 / jnp.sqrt(fan_in)
    w = jax.random.uniform(kw, (fan_in, fan_out), jnp.float32, -bound, bound)
    b = jax.random.uniform(kb, (1, fan_out), jnp.float32, -bound, bound)
    return w, b


if __name__ == "__main__":
    # Shapes consistent with the module: latent = encoder output (B, input_dim);
    # output_dim = total table columns.
    B, input_dim, hidden_dim, output_dim = 8, 16, 32, 24
    # dt_dict -> dt_dict_up = {'int': 10, 'float': 14}; activation split at n_float = 14.
    dt_dict = {"int_cols": 10, "float_cols": 14}
    n_float = list(dt_dict.values())[1]

    key = jax.random.PRNGKey(0)
    k_lat, k_l1, k_l2 = jax.random.split(key, 3)

    latent = jax.random.normal(k_lat, (B, input_dim), jnp.float32)
    w1, b1 = init_linear(k_l1, input_dim, hidden_dim)
    w2, b2 = init_linear(k_l2, hidden_dim, output_dim)

    ref = outcome_decoder_ref(latent, w1, b1, w2, b2, n_float=n_float)

    # f32 path (matches the module's `.to(float32)` semantics); params prepared ONCE.
    params = prepare_decoder_params(w1, b1, w2, b2)
    out = jax.block_until_ready(outcome_decoder(latent, params, n_float=n_float))
    assert out.shape == (B, output_dim)
    assert jnp.allclose(out, ref, atol=1e-5, rtol=1e-5), "f32 path mismatch"

    # Multi-step grid with a partial last block (B not a multiple of the tile).
    B2 = 200
    lat2 = jax.random.normal(jax.random.PRNGKey(1), (B2, input_dim), jnp.float32)
    out2 = jax.block_until_ready(
        outcome_decoder(lat2, params, n_float=n_float, tm=64))
    ref2 = outcome_decoder_ref(lat2, w1, b1, w2, b2, n_float=n_float)
    assert out2.shape == (B2, output_dim)
    assert jnp.allclose(out2, ref2, atol=1e-5, rtol=1e-5), "gridded path mismatch"

    # Truly ragged edge block (B not a multiple of the 8-row sublane).
    B3 = 13
    lat3 = jax.random.normal(jax.random.PRNGKey(2), (B3, input_dim), jnp.float32)
    out3 = jax.block_until_ready(
        outcome_decoder(lat3, params, n_float=n_float, tm=8))
    ref3 = outcome_decoder_ref(lat3, w1, b1, w2, b2, n_float=n_float)
    assert out3.shape == (B3, output_dim)
    assert jnp.allclose(out3, ref3, atol=1e-5, rtol=1e-5), "ragged path mismatch"

    # Optional bf16-MXU throughput mode (looser tolerance, same structure).
    params_bf = prepare_decoder_params(w1, b1, w2, b2, use_bf16=True)
    out_bf = jax.block_until_ready(
        outcome_decoder(latent, params_bf, n_float=n_float))
    assert jnp.allclose(out_bf, ref, atol=5e-2, rtol=5e-2), "bf16 path mismatch"

    print("KERNEL_OK")
</pallas_src>

<mosaic_0001>
module attributes {stable_mosaic.version = 11 : i64} {
  func.func @_decoder_kernel(%arg0: i32, %arg1: memref<8x16xf32, #tpu.memory_space<vmem>>, %arg2: memref<16x128xf32, #tpu.memory_space<vmem>>, %arg3: memref<1x128xf32, #tpu.memory_space<vmem>>, %arg4: memref<128x24xf32, #tpu.memory_space<vmem>>, %arg5: memref<1x24xf32, #tpu.memory_space<vmem>>, %arg6: memref<8x24xf32, #tpu.memory_space<vmem>>) attributes {dimension_semantics = [#tpu.dimension_semantics<parallel>], iteration_bounds = array<i64: 1>, scalar_prefetch = 0 : i64, scratch_operands = 0 : i64, tpu.core_type = #tpu.core_type<tc>, window_params = [{transform_indices = @transform_0, window_bounds = array<i64: 8, 16>}, {pipeline_mode = #tpu.pipeline_mode<synchronous>, transform_indices = @transform_1, window_bounds = array<i64: 16, 128>}, {pipeline_mode = #tpu.pipeline_mode<synchronous>, transform_indices = @transform_2, window_bounds = array<i64: 1, 128>}, {pipeline_mode = #tpu.pipeline_mode<synchronous>, transform_indices = @transform_3, window_bounds = array<i64: 128, 24>}, {pipeline_mode = #tpu.pipeline_mode<synchronous>, transform_indices = @transform_4, window_bounds = array<i64: 1, 24>}, {transform_indices = @transform_5, window_bounds = array<i64: 8, 24>}]} {
    %c0 = arith.constant 0 : index
    %c0_0 = arith.constant 0 : index
    %0 = vector.load %arg1[%c0, %c0_0] : memref<8x16xf32, #tpu.memory_space<vmem>>, vector<8x16xf32>
    %c0_1 = arith.constant 0 : index
    %c0_2 = arith.constant 0 : index
    %1 = vector.load %arg2[%c0_1, %c0_2] : memref<16x128xf32, #tpu.memory_space<vmem>>, vector<16x128xf32>
    %cst = arith.constant dense<0.000000e+00> : vector<8x128xf32>
    %2 = tpu.matmul %0, %1, %cst {dimension_numbers = #tpu.dot_dimension_numbers<[1], [0], [0], [1], [0, 0, 1, 1], [], []>} : vector<8x16xf32>, vector<16x128xf32>, vector<8x128xf32> -> vector<8x128xf32>
    %c0_3 = arith.constant 0 : index
    %c0_4 = arith.constant 0 : index
    %3 = vector.load %arg3[%c0_3, %c0_4] : memref<1x128xf32, #tpu.memory_space<vmem>>, vector<1x128xf32>
    %4 = vector.broadcast %3 : vector<1x128xf32> to vector<8x128xf32>
    %5 = arith.addf %2, %4 : vector<8x128xf32>
    %cst_5 = arith.constant 0.000000e+00 : f32
    %6 = vector.broadcast %cst_5 : f32 to vector<8x128xf32>
    %7 = arith.maximumf %5, %6 : vector<8x128xf32>
    %c0_6 = arith.constant 0 : index
    %c0_7 = arith.constant 0 : index
    %8 = vector.load %arg4[%c0_6, %c0_7] : memref<128x24xf32, #tpu.memory_space<vmem>>, vector<128x24xf32>
    %cst_8 = arith.constant dense<0.000000e+00> : vector<8x24xf32>
    %9 = tpu.matmul %7, %8, %cst_8 {dimension_numbers = #tpu.dot_dimension_numbers<[1], [0], [0], [1], [0, 0, 1, 1], [], []>} : vector<8x128xf32>, vector<128x24xf32>, vector<8x24xf32> -> vector<8x24xf32>
    %c0_9 = arith.constant 0 : index
    %c0_10 = arith.constant 0 : index
    %10 = vector.load %arg5[%c0_9, %c0_10] : memref<1x24xf32, #tpu.memory_space<vmem>>, vector<1x24xf32>
    %11 = vector.broadcast %10 : vector<1x24xf32> to vector<8x24xf32>
    %12 = arith.addf %9, %11 : vector<8x24xf32>
    %13 = tpu.iota {dimensions = array<i32: 1>} : vector<1x24xi32>
    %cst_11 = arith.constant 0.000000e+00 : f32
    %14 = vector.broadcast %cst_11 : f32 to vector<8x24xf32>
    %15 = arith.maximumf %12, %14 : vector<8x24xf32>
    %cst_12 = arith.constant 0.000000e+00 : f32
    %16 = vector.broadcast %cst_12 : f32 to vector<8x24xf32>
    %17 = arith.subf %16, %12 : vector<8x24xf32>
    %18 = math.exp %17 : vector<8x24xf32>
    %cst_13 = arith.constant 1.000000e+00 : f32
    %19 = vector.broadcast %cst_13 : f32 to vector<8x24xf32>
    %20 = arith.addf %19, %18 : vector<8x24xf32>
    %21 = tpu.reciprocal %20 : vector<8x24xf32> -> vector<8x24xf32>
    %c14_i32 = arith.constant 14 : i32
    %22 = vector.broadcast %c14_i32 : i32 to vector<1x24xi32>
    %23 = arith.cmpi slt, %13, %22 : vector<1x24xi32>
    %24 = vector.shape_cast %23 : vector<1x24xi1> to vector<1x24xi1>
    %25 = vector.broadcast %24 : vector<1x24xi1> to vector<8x24xi1>
    %26 = arith.select %25, %15, %21 : vector<8x24xi1>, vector<8x24xf32>
    %c0_14 = arith.constant 0 : index
    %c0_15 = arith.constant 0 : index
    %27 = vector.load %arg6[%c0_14, %c0_15] : memref<8x24xf32, #tpu.memory_space<vmem>>, vector<8x24xf32>
    tpu.vector_store %arg6[%c0_14, %c0_15], %26 {strides = array<i32>} : memref<8x24xf32, #tpu.memory_space<vmem>>, vector<8x24xf32>,
    return
  }
  func.func @transform_0(%arg0: i32) -> (i32, i32) {
    %c0_i32 = arith.constant 0 : i32
    %c0_i32_0 = arith.constant 0 : i32
    return %arg0, %c0_i32 : i32, i32
  }
  func.func @transform_1(%arg0: i32) -> (i32, i32) {
    %c0_i32 = arith.constant 0 : i32
    %c0_i32_0 = arith.constant 0 : i32
    %c0_i32_1 = arith.constant 0 : i32
    return %c0_i32, %c0_i32_0 : i32, i32
  }
  func.func @transform_2(%arg0: i32) -> (i32, i32) {
    %c0_i32 = arith.constant 0 : i32
    %c0_i32_0 = arith.constant 0 : i32
    %c0_i32_1 = arith.constant 0 : i32
    return %c0_i32, %c0_i32_0 : i32, i32
  }
  func.func @transform_3(%arg0: i32) -> (i32, i32) {
    %c0_i32 = arith.constant 0 : i32
    %c0_i32_0 = arith.constant 0 : i32
    %c0_i32_1 = arith.constant 0 : i32
    return %c0_i32, %c0_i32_0 : i32, i32
  }
  func.func @transform_4(%arg0: i32) -> (i32, i32) {
    %c0_i32 = arith.constant 0 : i32
    %c0_i32_0 = arith.constant 0 : i32
    %c0_i32_1 = arith.constant 0 : i32
    return %c0_i32, %c0_i32_0 : i32, i32
  }
  func.func @transform_5(%arg0: i32) -> (i32, i32) {
    %c0_i32 = arith.constant 0 : i32
    %c0_i32_0 = arith.constant 0 : i32
    return %arg0, %c0_i32 : i32, i32
  }
}

module attributes {stable_mosaic.version = 11 : i64} {
  func.func @_decoder_kernel(%arg0: i32, %arg1: memref<8x16xf32, #tpu.memory_space<vmem>>, %arg2: memref<16x128xf32, #tpu.memory_space<vmem>>, %arg3: memref<1x128xf32, #tpu.memory_space<vmem>>, %arg4: memref<128x24xf32, #tpu.memory_space<vmem>>, %arg5: memref<1x24xf32, #tpu.memory_space<vmem>>, %arg6: memref<8x24xf32, #tpu.memory_space<vmem>>) attributes {dimension_semantics = [#tpu.dimension_semantics<parallel>], iteration_bounds = array<i64: 1>, scalar_prefetch = 0 : i64, scratch_operands = 0 : i64, tpu.core_type = #tpu.core_type<tc>, window_params = [{transform_indices = @transform_0, window_bounds = array<i64: 8, 16>}, {pipeline_mode = #tpu.pipeline_mode<synchronous>, transform_indices = @transform_1, window_bounds = array<i64: 16, 128>}, {pipeline_mode = #tpu.pipeline_mode<synchronous>, transform_indices = @transform_2, window_bounds = array<i64: 1, 128>}, {pipeline_mode = #tpu.pipeline_mode<synchronous>, transform_indices = @transform_3, window_bounds = array<i64: 128, 24>}, {pipeline_mode = #tpu.pipeline_mode<synchronous>, transform_indices = @transform_4, window_bounds = array<i64: 1, 24>}, {transform_indices = @transform_5, window_bounds = array<i64: 8, 24>}]} {
    %c0 = arith.constant 0 : index
    %c0_0 = arith.constant 0 : index
    %0 = vector.load %arg1[%c0, %c0_0] : memref<8x16xf32, #tpu.memory_space<vmem>>, vector<8x16xf32>
    %c0_1 = arith.constant 0 : index
    %c0_2 = arith.constant 0 : index
    %1 = vector.load %arg2[%c0_1, %c0_2] : memref<16x128xf32, #tpu.memory_space<vmem>>, vector<16x128xf32>
    %cst = arith.constant dense<0.000000e+00> : vector<8x128xf32>
    %2 = tpu.matmul %0, %1, %cst {dimension_numbers = #tpu.dot_dimension_numbers<[1], [0], [0], [1], [0, 0, 1, 1], [], []>} : vector<8x16xf32>, vector<16x128xf32>, vector<8x128xf32> -> vector<8x128xf32>
    %c0_3 = arith.constant 0 : index
    %c0_4 = arith.constant 0 : index
    %3 = vector.load %arg3[%c0_3, %c0_4] : memref<1x128xf32, #tpu.memory_space<vmem>>, vector<1x128xf32>
    %4 = vector.broadcast %3 : vector<1x128xf32> to vector<8x128xf32>
    %5 = arith.addf %2, %4 : vector<8x128xf32>
    %cst_5 = arith.constant 0.000000e+00 : f32
    %6 = vector.broadcast %cst_5 : f32 to vector<8x128xf32>
    %7 = arith.maximumf %5, %6 : vector<8x128xf32>
    %c0_6 = arith.constant 0 : index
    %c0_7 = arith.constant 0 : index
    %8 = vector.load %arg4[%c0_6, %c0_7] : memref<128x24xf32, #tpu.memory_space<vmem>>, vector<128x24xf32>
    %cst_8 = arith.constant dense<0.000000e+00> : vector<8x24xf32>
    %9 = tpu.matmul %7, %8, %cst_8 {dimension_numbers = #tpu.dot_dimension_numbers<[1], [0], [0], [1], [0, 0, 1, 1], [], []>} : vector<8x128xf32>, vector<128x24xf32>, vector<8x24xf32> -> vector<8x24xf32>
    %c0_9 = arith.constant 0 : index
    %c0_10 = arith.constant 0 : index
    %10 = vector.load %arg5[%c0_9, %c0_10] : memref<1x24xf32, #tpu.memory_space<vmem>>, vector<1x24xf32>
    %11 = vector.broadcast %10 : vector<1x24xf32> to vector<8x24xf32>
    %12 = arith.addf %9, %11 : vector<8x24xf32>
    %13 = tpu.iota {dimensions = array<i32: 1>} : vector<1x24xi32>
    %cst_11 = arith.constant 0.000000e+00 : f32
    %14 = vector.broadcast %cst_11 : f32 to vector<8x24xf32>
    %15 = arith.maximumf %12, %14 : vector<8x24xf32>
    %cst_12 = arith.constant 0.000000e+00 : f32
    %16 = vector.broadcast %cst_12 : f32 to vector<8x24xf32>
    %17 = arith.subf %16, %12 : vector<8x24xf32>
    %18 = math.exp %17 : vector<8x24xf32>
    %cst_13 = arith.constant 1.000000e+00 : f32
    %19 = vector.broadcast %cst_13 : f32 to vector<8x24xf32>
    %20 = arith.addf %19, %18 : vector<8x24xf32>
    %21 = tpu.reciprocal %20 : vector<8x24xf32> -> vector<8x24xf32>
    %c14_i32 = arith.constant 14 : i32
    %22 = vector.broadcast %c14_i32 : i32 to vector<1x24xi32>
    %23 = arith.cmpi slt, %13, %22 : vector<1x24xi32>
    %24 = vector.shape_cast %23 : vector<1x24xi1> to vector<1x24xi1>
    %25 = vector.broadcast %24 : vector<1x24xi1> to vector<8x24xi1>
    %26 = arith.select %25, %15, %21 : vector<8x24xi1>, vector<8x24xf32>
    %c0_14 = arith.constant 0 : index
    %c0_15 = arith.constant 0 : index
    %27 = vector.load %arg6[%c0_14, %c0_15] : memref<8x24xf32, #tpu.memory_space<vmem>>, vector<8x24xf32>
    tpu.vector_store %arg6[%c0_14, %c0_15], %26 {strides = array<i32>} : memref<8x24xf32, #tpu.memory_space<vmem>>, vector<8x24xf32>,
    return
  }
  func.func @transform_0(%arg0: i32) -> (i32, i32) {
    %c0_i32 = arith.constant 0 : i32
    %c0_i32_0 = arith.constant 0 : i32
    return %arg0, %c0_i32 : i32, i32
  }
  func.func @transform_1(%arg0: i32) -> (i32, i32) {
    %c0_i32 = arith.constant 0 : i32
    %c0_i32_0 = arith.constant 0 : i32
    %c0_i32_1 = arith.constant 0 : i32
    return %c0_i32, %c0_i32_0 : i32, i32
  }
  func.func @transform_2(%arg0: i32) -> (i32, i32) {
    %c0_i32 = arith.constant 0 : i32
    %c0_i32_0 = arith.constant 0 : i32
    %c0_i32_1 = arith.constant 0 : i32
    return %c0_i32, %c0_i32_0 : i32, i32
  }
  func.func @transform_3(%arg0: i32) -> (i32, i32) {
    %c0_i32 = arith.constant 0 : i32
    %c0_i32_0 = arith.constant 0 : i32
    %c0_i32_1 = arith.constant 0 : i32
    return %c0_i32, %c0_i32_0 : i32, i32
  }
  func.func @transform_4(%arg0: i32) -> (i32, i32) {
    %c0_i32 = arith.constant 0 : i32
    %c0_i32_0 = arith.constant 0 : i32
    %c0_i32_1 = arith.constant 0 : i32
    return %c0_i32, %c0_i32_0 : i32, i32
  }
  func.func @transform_5(%arg0: i32) -> (i32, i32) {
    %c0_i32 = arith.constant 0 : i32
    %c0_i32_0 = arith.constant 0 : i32
    return %arg0, %c0_i32 : i32, i32
  }
}

</mosaic_0001>

<llo_original>
// kernel: tpu_custom_call.1
$region0: #{tpu_custom_call.1}
  #allocation0 [shape = 'u32[]', space=smem, size = 0x4, offset = 0x4, fixed_abs, tag = 'smem constant byte address 0x4 - core index']
  #allocation1 [shape = 'u32[72,128]{1,0:T(1,128)}', space=vmem, size = 0x9000, scoped, tag = 'internal scratch']
  %s0 = inlined_call_operand.vmem [shape: f32[8,16], index: 0, kind: input, shape index: {}]
  %s1 = inlined_call_operand.vmem [shape: f32[16,128], index: 1, kind: input, shape index: {}]
  %s2 = inlined_call_operand.vmem [shape: f32[1,128], index: 2, kind: input, shape index: {}]
  %s3 = inlined_call_operand.vmem [shape: f32[128,24], index: 3, kind: input, shape index: {}]
  %s4 = inlined_call_operand.vmem [shape: f32[1,24], index: 4, kind: input, shape index: {}]
  %s5 = inlined_call_operand.hbm [shape: f32[8,24], index: 5, kind: output, shape index: {}]
  %s6 = sld [smem:[#allocation0]]
  $region30: #{tpu_custom_call.1} parent=0
    _
  %s8 = ssub.s32 1, %s6
  %s9 = scalar_select 0, %s8, %s6
  $region1: #{tpu_custom_call.1} parent=0
    #allocation2 [shape = 'u8[4096]{0}', space=vmem, size = 0x1000, scoped, tag = 'output window, operand 0, single buffered']
    #allocation3 [shape = 's32[1]{0}', space=sflag, size = 0x4, scoped, tag = 'scoped memory for tpu_custom_call.1']
    %10 = vsyncpa [#allocation3], 0
    // Predicated region
    $region2: #{tpu_custom_call.1} parent=1 // pred_check
      _
    $region3: #{tpu_custom_call.1} parent=1 // pred_check_branch
      %12 = sbr.rel (0) target = $region5
    $region4: #{tpu_custom_call.1} parent=1 // pred_region
      _
    $region5: #{tpu_custom_call.1} parent=1 // pred_fallthru
      _
    // Predicated region
    $region6: #{tpu_custom_call.1} parent=1 // pred_check
      _
    $region7: #{tpu_custom_call.1} parent=1 // pred_check_branch
      %14 = sbr.rel (0) target = $region9
    $region8: #{tpu_custom_call.1} parent=1 // pred_region
      _
    $region9: #{tpu_custom_call.1} parent=1 // pred_fallthru
      _
    // Predicated region
    $region10: #{tpu_custom_call.1} parent=1 // pred_check
      _
    $region11: #{tpu_custom_call.1} parent=1 // pred_check_branch
      %16 = sbr.rel (0) target = $region13
    $region12: #{tpu_custom_call.1} parent=1 // pred_region
      _
    $region13: #{tpu_custom_call.1} parent=1 // pred_fallthru
      _
    // Predicated region
    $region14: #{tpu_custom_call.1} parent=1 // pred_check
      _
    $region15: #{tpu_custom_call.1} parent=1 // pred_check_branch
      %18 = sbr.rel (0) target = $region17
    $region16: #{tpu_custom_call.1} parent=1 // pred_region
      _
    $region17: #{tpu_custom_call.1} parent=1 // pred_fallthru
      _
    // Predicated region
    $region18: #{tpu_custom_call.1} parent=1 // pred_check
      _
    $region19: #{tpu_custom_call.1} parent=1 // pred_check_branch
      %20 = sbr.rel (0) target = $region21
    $region20: #{tpu_custom_call.1} parent=1 // pred_region
      _
    $region21: #{tpu_custom_call.1} parent=1 // pred_fallthru
      _
    %v21 = vld [vmem:[%s0] sm:$0xff]
    %v22 = vld [vmem:[%s1] sm:$0xff]
    %v23 = vld [vmem:[%s1 + $0x8] sm:$0xff]
    %v24 = vld [vmem:[%s2] sm:$0x1]
    %v26 = vperm.slane %v24, 0
    %vm28 = vcmask 130048
    %v30 = vsel %vm28, %v21, 0
    %32 = vmatpush.msra.mxu0 0.0
    %33 = vmatpush.msra.mxu0 0.0
    %34 = vmatpush.msra.mxu0 0.0
    %35 = vmatpush.msra.mxu0 0.0
    %36 = vmatpush.msra.mxu0 0.0
    %37 = vmatpush.msra.mxu0 0.0
    %38 = vmatpush.msra.mxu0 0.0
    %39 = vmatpush.msra.mxu0 0.0
    %40 = vmatpush.msra.mxu0 0.0
    %41 = vmatpush.msra.mxu0 0.0
    %42 = vmatpush.msra.mxu0 0.0
    %43 = vmatpush.msra.mxu0 0.0
    %44 = vmatpush.msra.mxu0 0.0
    %45 = vmatpush.msra.mxu0 0.0
    %46 = vmatpush.msra.mxu0 %v23
    %47 = vmatpush.msra.mxu0 %v22
    %48 = vmatmul.f32.gmra.mxu0 %v30
    %v49 = vpop.f32.mrf.mxu0
    %v50 = vadd.f32 %v26, %v49
    %51 = vdwg.mxu0
    %v52 = vmax.f32 %v50, 0.0
    %v53 = vld [vmem:[%s3] sm:$0xff]
    %v54 = vld [vmem:[%s3 + $0x8] sm:$0xff]
    %v55 = vld [vmem:[%s3 + $0x10] sm:$0xff]
    %v56 = vld [vmem:[%s3 + $0x18] sm:$0xff]
    %v57 = vld [vmem:[%s3 + $0x20] sm:$0xff]
    %v58 = vld [vmem:[%s3 + $0x28] sm:$0xff]
    %v59 = vld [vmem:[%s3 + $0x30] sm:$0xff]
    %v60 = vld [vmem:[%s3 + $0x38] sm:$0xff]
    %v61 = vld [vmem:[%s3 + $0x40] sm:$0xff]
    %v62 = vld [vmem:[%s3 + $0x48] sm:$0xff]
    %v63 = vld [vmem:[%s3 + $0x50] sm:$0xff]
    %v64 = vld [vmem:[%s3 + $0x58] sm:$0xff]
    %v65 = vld [vmem:[%s3 + $0x60] sm:$0xff]
    %v66 = vld [vmem:[%s3 + $0x68] sm:$0xff]
    %v67 = vld [vmem:[%s3 + $0x70] sm:$0xff]
    %v68 = vld [vmem:[%s3 + $0x78] sm:$0xff]
    %v69 = vld [vmem:[%s4] sm:$0x1]
    %v71 = vperm.slane %v69, 0
    %73 = vmatpush.msra.mxu0 %v68
    %74 = vmatpush.msra.mxu0 %v67
    %75 = vmatpush.msra.mxu0 %v66
    %76 = vmatpush.msra.mxu0 %v65
    %77 = vmatpush.msra.mxu0 %v64
    %78 = vmatpush.msra.mxu0 %v63
    %79 = vmatpush.msra.mxu0 %v62
    %80 = vmatpush.msra.mxu0 %v61
    %81 = vmatpush.msra.mxu0 %v60
    %82 = vmatpush.msra.mxu0 %v59
    %83 = vmatpush.msra.mxu0 %v58
    %84 = vmatpush.msra.mxu0 %v57
    %85 = vmatpush.msra.mxu0 %v56
    %86 = vmatpush.msra.mxu0 %v55
    %87 = vmatpush.msra.mxu0 %v54
    %88 = vmatpush.msra.mxu0 %v53
    %89 = vmatmul.f32.gmra.mxu0 %v52
    %v90 = vpop.f32.mrf.mxu0
    %v91 = vadd.f32 %v71, %v90
    %92 = vdwg.mxu0
    %v93 = vlaneseq
    %v94 = vand.u32 %v93, 127
    %v95 = vmax.f32 %v91, 0.0
    %v96 = vsub.f32 0.0, %v91
    %v97 = vmul.f32 %v96, 1.442695
    %v98 = vpow.pop %v97
    %v99 = vadd.f32 %v98, 1.0
    %v100 = vrcp.pop %v99
    %v101 = vmul.f32 %v99, %v100
    %v102 = vsub.f32 1.0, %v101
    %v103 = vmul.f32 %v100, %v102
    %v104 = vadd.f32 %v100, %v103
    %vm105 = vweird.f32 %v99
    %vm106 = vweird.f32 %v100
    %vm107 = vmor %vm105, %vm106
    %v108 = vsel %vm107, %v100, %v104
    %v109 = vand.u32 2147483647, %v99
    %vm110 = vcmp.eq.f32.partialorder %v109, 8.507059e+37
    %v111 = vand.u32 %v99, 2147483648
    %v112 = vor.u32 1.1754944e-38, %v111
    %v113 = vsel %vm110, %v112, %v108
    %vm114 = vcmp.lt.s32.totalorder %v94, 14
    %v115 = vsel %vm114, 1, 0
    %vm116 = vcmp.eq.s32.totalorder %v115, 1
    %v117 = vsel %vm116, %v95, %v113
    %vm118 = vcmask 195584
    %119 = vst.msk [vmem:[#allocation2] sm:$0xff] %vm118, %v117
    // Predicated region
    $region22: #{tpu_custom_call.1} parent=1 // pred_check
      _
    $region23: #{tpu_custom_call.1} parent=1 // pred_check_branch
      %121 = sbr.rel (0) target = $region25
    $region24: #{tpu_custom_call.1} parent=1 // pred_region
      %123 = vsyncadd [#allocation3], 0
      %s125 = sshll.u32 [#allocation2], 4
      %s126 = int_to_ptr.vmem [resolvable:$true] %s125
      %s127 = sshll.u32 %s5, 4
      %s128 = int_to_ptr.hbm [resolvable:$true] %s127
      %130 = dma.vmem_to_hbm [thread:$0]  %s126, 128, %s128, [#allocation3]
    $region25: #{tpu_custom_call.1} parent=1 // pred_fallthru
      _
    // Predicated region
    $region26: #{tpu_custom_call.1} parent=1 // pred_check
      _
    $region27: #{tpu_custom_call.1} parent=1 // pred_check_branch
      %132 = sbr.rel (0) target = $region29
    $region28: #{tpu_custom_call.1} parent=1 // pred_region
      %134 = dma.done [#allocation3], 128
    $region29: #{tpu_custom_call.1} parent=1 // pred_fallthru
      _
    %135 = vsyncpa [#allocation3], 1

// kernel: tpu_custom_call.1
$region0: #{tpu_custom_call.1}
  #allocation0 [shape = 'u32[]', space=smem, size = 0x4, offset = 0x4, fixed_abs, tag = 'smem constant byte address 0x4 - core index']
  #allocation1 [shape = 'u32[72,128]{1,0:T(1,128)}', space=vmem, size = 0x9000, scoped, tag = 'internal scratch']
  %s0 = inlined_call_operand.vmem [shape: f32[8,16], index: 0, kind: input, shape index: {}]
  %s1 = inlined_call_operand.vmem [shape: f32[16,128], index: 1, kind: input, shape index: {}]
  %s2 = inlined_call_operand.vmem [shape: f32[1,128], index: 2, kind: input, shape index: {}]
  %s3 = inlined_call_operand.vmem [shape: f32[128,24], index: 3, kind: input, shape index: {}]
  %s4 = inlined_call_operand.vmem [shape: f32[1,24], index: 4, kind: input, shape index: {}]
  %s5 = inlined_call_operand.hbm [shape: f32[8,24], index: 5, kind: output, shape index: {}]
  %s6 = sld [smem:[#allocation0]]
  $region30: #{tpu_custom_call.1} parent=0
    _
  %s8 = ssub.s32 1, %s6
  %s9 = scalar_select 0, %s8, %s6
  $region1: #{tpu_custom_call.1} parent=0
    #allocation2 [shape = 'u8[4096]{0}', space=vmem, size = 0x1000, scoped, tag = 'output window, operand 0, single buffered']
    #allocation3 [shape = 's32[1]{0}', space=sflag, size = 0x4, scoped, tag = 'scoped memory for tpu_custom_call.1']
    %10 = vsyncpa [#allocation3], 0
    // Predicated region
    $region2: #{tpu_custom_call.1} parent=1 // pred_check
      _
    $region3: #{tpu_custom_call.1} parent=1 // pred_check_branch
      %12 = sbr.rel (0) target = $region5
    $region4: #{tpu_custom_call.1} parent=1 // pred_region
      _
    $region5: #{tpu_custom_call.1} parent=1 // pred_fallthru
      _
    // Predicated region
    $region6: #{tpu_custom_call.1} parent=1 // pred_check
      _
    $region7: #{tpu_custom_call.1} parent=1 // pred_check_branch
      %14 = sbr.rel (0) target = $region9
    $region8: #{tpu_custom_call.1} parent=1 // pred_region
      _
    $region9: #{tpu_custom_call.1} parent=1 // pred_fallthru
      _
    // Predicated region
    $region10: #{tpu_custom_call.1} parent=1 // pred_check
      _
    $region11: #{tpu_custom_call.1} parent=1 // pred_check_branch
      %16 = sbr.rel (0) target = $region13
    $region12: #{tpu_custom_call.1} parent=1 // pred_region
      _
    $region13: #{tpu_custom_call.1} parent=1 // pred_fallthru
      _
    // Predicated region
    $region14: #{tpu_custom_call.1} parent=1 // pred_check
      _
    $region15: #{tpu_custom_call.1} parent=1 // pred_check_branch
      %18 = sbr.rel (0) target = $region17
    $region16: #{tpu_custom_call.1} parent=1 // pred_region
      _
    $region17: #{tpu_custom_call.1} parent=1 // pred_fallthru
      _
    // Predicated region
    $region18: #{tpu_custom_call.1} parent=1 // pred_check
      _
    $region19: #{tpu_custom_call.1} parent=1 // pred_check_branch
      %20 = sbr.rel (0) target = $region21
    $region20: #{tpu_custom_call.1} parent=1 // pred_region
      _
    $region21: #{tpu_custom_call.1} parent=1 // pred_fallthru
      _
    %v21 = vld [vmem:[%s0] sm:$0xff]
    %v22 = vld [vmem:[%s1] sm:$0xff]
    %v23 = vld [vmem:[%s1 + $0x8] sm:$0xff]
    %v24 = vld [vmem:[%s2] sm:$0x1]
    %v26 = vperm.slane %v24, 0
    %vm28 = vcmask 130048
    %v30 = vsel %vm28, %v21, 0
    %32 = vmatpush.msra.mxu0 0.0
    %33 = vmatpush.msra.mxu0 0.0
    %34 = vmatpush.msra.mxu0 0.0
    %35 = vmatpush.msra.mxu0 0.0
    %36 = vmatpush.msra.mxu0 0.0
    %37 = vmatpush.msra.mxu0 0.0
    %38 = vmatpush.msra.mxu0 0.0
    %39 = vmatpush.msra.mxu0 0.0
    %40 = vmatpush.msra.mxu0 0.0
    %41 = vmatpush.msra.mxu0 0.0
    %42 = vmatpush.msra.mxu0 0.0
    %43 = vmatpush.msra.mxu0 0.0
    %44 = vmatpush.msra.mxu0 0.0
    %45 = vmatpush.msra.mxu0 0.0
    %46 = vmatpush.msra.mxu0 %v23
    %47 = vmatpush.msra.mxu0 %v22
    %48 = vmatmul.f32.gmra.mxu0 %v30
    %v49 = vpop.f32.mrf.mxu0
    %v50 = vadd.f32 %v26, %v49
    %51 = vdwg.mxu0
    %v52 = vmax.f32 %v50, 0.0
    %v53 = vld [vmem:[%s3] sm:$0xff]
    %v54 = vld [vmem:[%s3 + $0x8] sm:$0xff]
    %v55 = vld [vmem:[%s3 + $0x10] sm:$0xff]
    %v56 = vld [vmem:[%s3 + $0x18] sm:$0xff]
    %v57 = vld [vmem:[%s3 + $0x20] sm:$0xff]
    %v58 = vld [vmem:[%s3 + $0x28] sm:$0xff]
    %v59 = vld [vmem:[%s3 + $0x30] sm:$0xff]
    %v60 = vld [vmem:[%s3 + $0x38] sm:$0xff]
    %v61 = vld [vmem:[%s3 + $0x40] sm:$0xff]
    %v62 = vld [vmem:[%s3 + $0x48] sm:$0xff]
    %v63 = vld [vmem:[%s3 + $0x50] sm:$0xff]
    %v64 = vld [vmem:[%s3 + $0x58] sm:$0xff]
    %v65 = vld [vmem:[%s3 + $0x60] sm:$0xff]
    %v66 = vld [vmem:[%s3 + $0x68] sm:$0xff]
    %v67 = vld [vmem:[%s3 + $0x70] sm:$0xff]
    %v68 = vld [vmem:[%s3 + $0x78] sm:$0xff]
    %v69 = vld [vmem:[%s4] sm:$0x1]
    %v71 = vperm.slane %v69, 0
    %73 = vmatpush.msra.mxu0 %v68
    %74 = vmatpush.msra.mxu0 %v67
    %75 = vmatpush.msra.mxu0 %v66
    %76 = vmatpush.msra.mxu0 %v65
    %77 = vmatpush.msra.mxu0 %v64
    %78 = vmatpush.msra.mxu0 %v63
    %79 = vmatpush.msra.mxu0 %v62
    %80 = vmatpush.msra.mxu0 %v61
    %81 = vmatpush.msra.mxu0 %v60
    %82 = vmatpush.msra.mxu0 %v59
    %83 = vmatpush.msra.mxu0 %v58
    %84 = vmatpush.msra.mxu0 %v57
    %85 = vmatpush.msra.mxu0 %v56
    %86 = vmatpush.msra.mxu0 %v55
    %87 = vmatpush.msra.mxu0 %v54
    %88 = vmatpush.msra.mxu0 %v53
    %89 = vmatmul.f32.gmra.mxu0 %v52
    %v90 = vpop.f32.mrf.mxu0
    %v91 = vadd.f32 %v71, %v90
    %92 = vdwg.mxu0
    %v93 = vlaneseq
    %v94 = vand.u32 %v93, 127
    %v95 = vmax.f32 %v91, 0.0
    %v96 = vsub.f32 0.0, %v91
    %v97 = vmul.f32 %v96, 1.442695
    %v98 = vpow.pop %v97
    %v99 = vadd.f32 %v98, 1.0
    %v100 = vrcp.pop %v99
    %v101 = vmul.f32 %v99, %v100
    %v102 = vsub.f32 1.0, %v101
    %v103 = vmul.f32 %v100, %v102
    %v104 = vadd.f32 %v100, %v103
    %vm105 = vweird.f32 %v99
    %vm106 = vweird.f32 %v100
    %vm107 = vmor %vm105, %vm106
    %v108 = vsel %vm107, %v100, %v104
    %v109 = vand.u32 2147483647, %v99
    %vm110 = vcmp.eq.f32.partialorder %v109, 8.507059e+37
    %v111 = vand.u32 %v99, 2147483648
    %v112 = vor.u32 1.1754944e-38, %v111
    %v113 = vsel %vm110, %v112, %v108
    %vm114 = vcmp.lt.s32.totalorder %v94, 14
    %v115 = vsel %vm114, 1, 0
    %vm116 = vcmp.eq.s32.totalorder %v115, 1
    %v117 = vsel %vm116, %v95, %v113
    %vm118 = vcmask 195584
    %119 = vst.msk [vmem:[#allocation2] sm:$0xff] %vm118, %v117
    // Predicated region
    $region22: #{tpu_custom_call.1} parent=1 // pred_check
      _
    $region23: #{tpu_custom_call.1} parent=1 // pred_check_branch
      %121 = sbr.rel (0) target = $region25
    $region24: #{tpu_custom_call.1} parent=1 // pred_region
      %123 = vsyncadd [#allocation3], 0
      %s125 = sshll.u32 [#allocation2], 4
      %s126 = int_to_ptr.vmem [resolvable:$true] %s125
      %s127 = sshll.u32 %s5, 4
      %s128 = int_to_ptr.hbm [resolvable:$true] %s127
      %130 = dma.vmem_to_hbm [thread:$0]  %s126, 128, %s128, [#allocation3]
    $region25: #{tpu_custom_call.1} parent=1 // pred_fallthru
      _
    // Predicated region
    $region26: #{tpu_custom_call.1} parent=1 // pred_check
      _
    $region27: #{tpu_custom_call.1} parent=1 // pred_check_branch
      %132 = sbr.rel (0) target = $region29
    $region28: #{tpu_custom_call.1} parent=1 // pred_region
      %134 = dma.done [#allocation3], 128
    $region29: #{tpu_custom_call.1} parent=1 // pred_fallthru
      _
    %135 = vsyncpa [#allocation3], 1

</llo_original>
